<compile_context>
chip_gen: v5e
topology: v5e:2x2
jax: 0.10.0
libtpu: 0.0.40
codegen_flags: <defaults>
</compile_context>

<pallas_src>
import jax
import jax.numpy as jnp
from jax.experimental import pallas as pl
from jax.experimental.pallas import tpu as pltpu

EXPANSION = 2
LANE = 128
_ACC_BUDGET_ELEMS = 32 * 1024        # f32 accumulator cap (128 KiB)


def _pad_up(n, m=LANE):
    return ((n + m - 1) // m) * m


def _row_tiling(l_ext, tn):
    """Output-row tile (multiple of 8) bounding the (tl, tn) f32 accumulator."""
    tl_max = max(8, (_ACC_BUDGET_ELEMS // tn) // 8 * 8)
    if l_ext <= tl_max:
        return l_ext, 1, l_ext
    n_r = -(-l_ext // tl_max)
    return tl_max, n_r, n_r * tl_max


def _compiler_params(vmem_need_bytes, semantics):
    # double-buffered blocks + headroom, clamped to be valid on v5e/v6e/v7x
    limit = int(min(max(2 * vmem_need_bytes + (4 << 20), 16 << 20), 40 << 20))
    return pltpu.CompilerParams(dimension_semantics=semantics,
                                vmem_limit_bytes=limit)


# ---------------------------------------------------------------------------
# Pallas kernels
# ---------------------------------------------------------------------------
def _make_conv3x3_kernel(taps, n_src, tl, relu, has_residual):
    """Fused 3x3 conv (9 shifted sub-matmuls) + folded-BN bias [+res] [+ReLU]."""
    def kernel(*refs):
        x_refs = refs[:n_src]
        w_ref = refs[n_src]              # (9, cin, tn)  bf16, BN scale folded
        b_ref = refs[n_src + 1]          # (1, tn)       f32
        r_ref = refs[n_src + 2] if has_residual else None
        o_ref = refs[-1]                 # (1, tl, tn)   bf16
        base = pl.program_id(2) * tl     # row-tile offset into flattened rows
        acc = None
        for t, (src, off) in enumerate(taps):
            lhs = x_refs[src][0, pl.ds(base + off, tl), :]      # (tl, cin) bf16
            part = jnp.dot(lhs, w_ref[t],
                           preferred_element_type=jnp.float32)  # MXU, f32 acc
            acc = part if acc is None else acc + part
        out = acc + b_ref[...]
        if has_residual:
            out = out + r_ref[0].astype(jnp.float32)
        if relu:
            out = jnp.maximum(out, 0.0)
        o_ref[0] = out.astype(o_ref.dtype)
    return kernel


def _make_maxpool_kernel(taps, n_src, tl):
    def kernel(*refs):
        x_refs = refs[:n_src]
        o_ref = refs[-1]
        base = pl.program_id(2) * tl
        m = None
        for src, off in taps:
            v = x_refs[src][0, pl.ds(base + off, tl), :]
            m = v if m is None else jnp.maximum(m, v)
        o_ref[0] = m
    return kernel


def _make_matmul_bias_kernel(relu):
    def kernel(x_ref, w_ref, b_ref, o_ref):
        acc = jnp.dot(x_ref[...], w_ref[...],
                      preferred_element_type=jnp.float32)
        acc = acc + b_ref[...]
        if relu:
            acc = jnp.maximum(acc, 0.0)
        o_ref[...] = acc.astype(o_ref.dtype)
    return kernel


def _avgpool_kernel(x_ref, o_ref):
    o_ref[...] = jnp.mean(x_ref[...].astype(jnp.float32),
                          axis=1).astype(o_ref.dtype)


# ---------------------------------------------------------------------------
# shifted-window plan: flatten spatial dims so every (ky,kx) tap of a 3x3
# window (stride 1 or 2) becomes a contiguous row slice of a flattened buffer.
# ---------------------------------------------------------------------------
def _shift_plan(xp, stride, l_rows, pad_value=0.0):
    """xp: spatially padded NHWC.  Returns (flat_srcs, taps, wp_x)."""
    n, _, _, cin = xp.shape
    if stride == 1:
        srcs = [xp]
        wp_x = xp.shape[2]
        taps = [(0, ky * wp_x + kx) for ky in range(3) for kx in range(3)]
    else:  # stride 2: 4-way spatial parity split (1x data, not 9x)
        srcs = [xp[:, py::2, px::2, :] for py in (0, 1) for px in (0, 1)]
        wp_x = srcs[0].shape[2]
        taps = [((ky % 2) * 2 + (kx % 2), (ky // 2) * wp_x + (kx // 2))
                for ky in range(3) for kx in range(3)]
    flat = []
    for si, s in enumerate(srcs):
        r_nat = s.shape[1] * s.shape[2]
        need = max(off for s_i, off in taps if s_i == si) + l_rows
        sf = s.reshape(n, r_nat, cin)
        if need > r_nat:                       # tiny tail pad (few rows)
            sf = jnp.pad(sf, ((0, 0), (0, need - r_nat), (0, 0)),
                         constant_values=pad_value)
        flat.append(sf)
    return flat, taps, wp_x


# ---------------------------------------------------------------------------
# Pallas wrappers
# ---------------------------------------------------------------------------
def conv3x3_bn_act(x_nhwc, w9, bias, stride, relu, residual=None):
    """x: (N,H,W,Cin) bf16;  w9: (9,Cin,Cout) bf16 (BN-folded);  bias: (1,Cout) f32."""
    n, h, w, cin = x_nhwc.shape
    cout = w9.shape[-1]
    assert cin % LANE == 0 and cout % LANE == 0
    if stride == 2:
        assert h % 2 == 0 and w % 2 == 0
    ho = (h + 2 - 3) // stride + 1
    wo = (w + 2 - 3) // stride + 1
    wp_x = (w + 2) if stride == 1 else (w + 2) // 2
    l_ext = ho * wp_x

    tn = 256 if cout % 256 == 0 else 128
    tl, n_r, l_pad = _row_tiling(l_ext, tn)

    xp = jnp.pad(x_nhwc, ((0, 0), (1, 1), (1, 1), (0, 0)))
    flat, taps, _ = _shift_plan(xp, stride, l_pad)
    n_src = len(flat)
    kernel = _make_conv3x3_kernel(taps, n_src, tl, relu, residual is not None)

    in_specs, args = [], []
    for s in flat:
        # Whole-rows block per batch element; index map invariant in (j, r)
        # -> fetched once per batch element, reused across cout/row tiles.
        in_specs.append(pl.BlockSpec((1, s.shape[1], cin),
                                     lambda j, b, r: (b, 0, 0)))
        args.append(s)
    # Weight block index invariant along the inner (batch,row) axes -> one DMA
    # per cout tile instead of per batch element.
    in_specs.append(pl.BlockSpec((9, cin, tn), lambda j, b, r: (0, 0, j)))
    args.append(w9)
    in_specs.append(pl.BlockSpec((1, tn), lambda j, b, r: (0, j)))
    args.append(bias)
    if residual is not None:
        res = jnp.pad(residual, ((0, 0), (0, 0), (0, wp_x - wo), (0, 0)))
        res = res.reshape(n, l_ext, cout)
        if l_pad != l_ext:
            res = jnp.pad(res, ((0, 0), (0, l_pad - l_ext), (0, 0)))
        in_specs.append(pl.BlockSpec((1, tl, tn), lambda j, b, r: (b, r, j)))
        args.append(res)

    vmem_need = (sum(int(s.shape[1]) * cin * 2 for s in flat)
                 + 9 * cin * tn * 2 + tn * 4
                 + (tl * tn * 2 if residual is not None else 0)
                 + tl * tn * 2)

    out_ext = pl.pallas_call(
        kernel,
        out_shape=jax.ShapeDtypeStruct((n, l_pad, cout), jnp.bfloat16),
        grid=(cout // tn, n, n_r),
        in_specs=in_specs,
        out_specs=pl.BlockSpec((1, tl, tn), lambda j, b, r: (b, r, j)),
        compiler_params=_compiler_params(
            vmem_need, ("parallel", "parallel", "parallel")),
    )(*args)

    if l_pad != l_ext:
        out_ext = out_ext[:, :l_ext]
    return out_ext.reshape(n, ho, wp_x, cout)[:, :, :wo, :]


def maxpool2d_3x3_s2_p1(x_nhwc):
    n, h, w, c = x_nhwc.shape
    assert h % 2 == 0 and w % 2 == 0 and c % LANE == 0
    ho, wo = h // 2, w // 2
    tc = 256 if c % 256 == 0 else 128
    wp_x = (w + 2) // 2
    l_ext = ho * wp_x
    tl, n_r, l_pad = _row_tiling(l_ext, tc)

    xp = jnp.pad(x_nhwc, ((0, 0), (1, 1), (1, 1), (0, 0)),
                 constant_values=-jnp.inf)
    flat, taps, _ = _shift_plan(xp, 2, l_pad, pad_value=-jnp.inf)
    kernel = _make_maxpool_kernel(taps, len(flat), tl)
    in_specs = [pl.BlockSpec((1, s.shape[1], tc), lambda j, b, r: (b, 0, j))
                for s in flat]
    vmem_need = sum(int(s.shape[1]) * tc * 2 for s in flat) + tl * tc * 2

    out = pl.pallas_call(
        kernel,
        out_shape=jax.ShapeDtypeStruct((n, l_pad, c), x_nhwc.dtype),
        grid=(c // tc, n, n_r),
        in_specs=in_specs,
        out_specs=pl.BlockSpec((1, tl, tc), lambda j, b, r: (b, r, j)),
        compiler_params=_compiler_params(
            vmem_need, ("parallel", "parallel", "parallel")),
    )(*flat)

    if l_pad != l_ext:
        out = out[:, :l_ext]
    return out.reshape(n, ho, wp_x, c)[:, :, :wo, :]


def fused_matmul_bias(x, w, bias, relu=False, out_dtype=jnp.bfloat16):
    """x (M,K) bf16 @ w (K,N) bf16 + bias (1,N) f32 [+ReLU] -> (M,N)."""
    m, k = x.shape
    kw, nn = w.shape
    assert k == kw and nn % LANE == 0
    tn = 256 if nn % 256 == 0 else 128
    tm_max = 512
    if m <= tm_max:
        tm, mp, xpd = m, m, x
    else:
        tm = tm_max
        mp = ((m + tm - 1) // tm) * tm
        xpd = jnp.pad(x, ((0, mp - m), (0, 0)))
    vmem_need = tm * k * 2 + k * tn * 2 + tn * 4 + tm * tn * 4
    out = pl.pallas_call(
        _make_matmul_bias_kernel(relu),
        out_shape=jax.ShapeDtypeStruct((mp, nn), out_dtype),
        grid=(mp // tm, nn // tn),
        in_specs=[pl.BlockSpec((tm, k), lambda i, j: (i, 0)),
                  pl.BlockSpec((k, tn), lambda i, j: (0, j)),
                  pl.BlockSpec((1, tn), lambda i, j: (0, j))],
        out_specs=pl.BlockSpec((tm, tn), lambda i, j: (i, j)),
        compiler_params=_compiler_params(vmem_need, ("parallel", "parallel")),
    )(xpd, w, bias)
    return out[:m] if mp != m else out


def stem_conv_bn_relu(x_nhwc, w_mat, bias):
    """Stem 3x3/s1 conv on the 3-channel input: cheap one-time im2col (27
    channels, padded to 128) + a single fused matmul+bias+ReLU kernel."""
    n, h, w, cin = x_nhwc.shape
    xp = jnp.pad(x_nhwc, ((0, 0), (1, 1), (1, 1), (0, 0)))
    patches = jnp.concatenate(
        [xp[:, ky:ky + h, kx:kx + w, :] for ky in range(3) for kx in range(3)],
        axis=-1)                                           # (n, h, w, 9*cin)
    k_real = 9 * cin
    k_pad = w_mat.shape[0]
    pat = patches.reshape(n * h * w, k_real)
    if k_pad > k_real:
        pat = jnp.pad(pat, ((0, 0), (0, k_pad - k_real)))
    pat = pat.astype(jnp.bfloat16)
    cout = w_mat.shape[1]
    out = fused_matmul_bias(pat, w_mat, bias, relu=True)
    return out.reshape(n, h, w, cout)


def global_avgpool(x_nhwc):
    n, h, w, c = x_nhwc.shape
    assert c % LANE == 0
    xr = x_nhwc.reshape(n, h * w, c)
    tc = 256 if c % 256 == 0 else 128
    vmem_need = n * h * w * tc * 2 + n * tc * 2
    return pl.pallas_call(
        _avgpool_kernel,
        out_shape=jax.ShapeDtypeStruct((n, c), jnp.bfloat16),
        grid=(c // tc,),
        in_specs=[pl.BlockSpec((n, h * w, tc), lambda j: (0, 0, j))],
        out_specs=pl.BlockSpec((n, tc), lambda j: (0, j)),
        compiler_params=_compiler_params(vmem_need, ("parallel",)),
    )(xr)


def conv1x1_bn(x_nhwc, w, bias, stride):
    n, h, ww, c = x_nhwc.shape
    # TODO(synk): the stride-2 subsample is a wrapper slice (one extra small
    #             HBM copy); could be folded into the BlockSpec index map.
    xs = x_nhwc[:, ::stride, ::stride, :] if stride > 1 else x_nhwc
    ho, wo = xs.shape[1], xs.shape[2]
    cout = w.shape[1]
    out = fused_matmul_bias(xs.reshape(n * ho * wo, c), w, bias,
                            out_dtype=jnp.bfloat16)
    return out.reshape(n, ho, wo, cout)


# ---------------------------------------------------------------------------
# Parameter init (PyTorch-like) + one-time inference preparation
# ---------------------------------------------------------------------------
def init_raw_params(key, image_channels, num_classes, layers, initial_out):
    keys = iter(jax.random.split(key, 256))

    def conv_w(cout, cin, k):
        fan_in = cin * k * k
        return jax.random.normal(next(keys), (cout, cin, k, k),
                                 jnp.float32) / jnp.sqrt(float(fan_in))

    def bn_p(c):
        gamma = 1.0 + 0.1 * jax.random.normal(next(keys), (c,), jnp.float32)
        beta = 0.1 * jax.random.normal(next(keys), (c,), jnp.float32)
        mean = 0.1 * jax.random.normal(next(keys), (c,), jnp.float32)
        var = 1.0 + 0.1 * jnp.abs(jax.random.normal(next(keys), (c,),
                                                    jnp.float32))
        return (gamma, beta, mean, var)

    raw = {"conv1": conv_w(initial_out, image_channels, 3),
           "bn1": bn_p(initial_out), "layers": []}
    in_ch = initial_out
    cfg = [(layers[0], initial_out, 1), (layers[1], initial_out * 2, 2),
           (layers[2], initial_out * 4, 2), (layers[3], initial_out * 8, 2)]
    for nblocks, out_ch, first_stride in cfg:
        blocks = []
        for s in [first_stride] + [1] * (nblocks - 1):
            bp = {"stride": s,
                  "conv1": conv_w(out_ch, in_ch, 3), "bn1": bn_p(out_ch),
                  "conv2": conv_w(out_ch * EXPANSION, out_ch, 3),
                  "bn2": bn_p(out_ch * EXPANSION)}
            if s != 1 or in_ch != out_ch * EXPANSION:
                bp["down_conv"] = conv_w(out_ch * EXPANSION, in_ch, 1)
                bp["down_bn"] = bn_p(out_ch * EXPANSION)
            blocks.append(bp)
            in_ch = out_ch * EXPANSION
        raw["layers"].append(blocks)
    feat = initial_out * 16
    raw["linear_w"] = jax.random.normal(next(keys), (num_classes, feat),
                                        jnp.float32) / jnp.sqrt(float(feat))
    raw["linear_b"] = 0.1 * jax.random.normal(next(keys), (num_classes,),
                                              jnp.float32)
    return raw


def _fold_bn(bn, eps=1e-5):
    gamma, beta, mean, var = bn
    scale = gamma / jnp.sqrt(var + eps)
    return scale, beta - mean * scale


def _prep_conv3x3(w_oihw, bn):
    scale, bias = _fold_bn(bn)
    cout, cin, kh, kw = w_oihw.shape
    w = jnp.transpose(w_oihw, (2, 3, 1, 0)) * scale          # (3,3,cin,cout)
    w = w.reshape(kh * kw, cin, cout)
    cin_p, cout_p = _pad_up(cin), _pad_up(cout)
    w_p = jnp.zeros((kh * kw, cin_p, cout_p),
                    jnp.float32).at[:, :cin, :cout].set(w)
    b_p = jnp.zeros((1, cout_p), jnp.float32).at[0, :cout].set(bias)
    return w_p.astype(jnp.bfloat16), b_p


def _prep_conv3x3_im2col(w_oihw, bn):
    """Stem weights packed for the im2col path: (9*cin padded to 128, cout)."""
    scale, bias = _fold_bn(bn)
    cout, cin, kh, kw = w_oihw.shape
    w = jnp.transpose(w_oihw, (2, 3, 1, 0)) * scale          # (3,3,cin,cout)
    w = w.reshape(kh * kw * cin, cout)
    k_p, cout_p = _pad_up(kh * kw * cin), _pad_up(cout)
    w_p = jnp.zeros((k_p, cout_p),
                    jnp.float32).at[:kh * kw * cin, :cout].set(w)
    b_p = jnp.zeros((1, cout_p), jnp.float32).at[0, :cout].set(bias)
    return w_p.astype(jnp.bfloat16), b_p


def _prep_conv1x1(w_oihw, bn):
    scale, bias = _fold_bn(bn)
    cout, cin = w_oihw.shape[0], w_oihw.shape[1]
    w = w_oihw.reshape(cout, cin).T * scale                  # (cin, cout)
    cin_p, cout_p = _pad_up(cin), _pad_up(cout)
    w_p = jnp.zeros((cin_p, cout_p), jnp.float32).at[:cin, :cout].set(w)
    b_p = jnp.zeros((1, cout_p), jnp.float32).at[0, :cout].set(bias)
    return w_p.astype(jnp.bfloat16), b_p


def prepare_params(raw, num_classes):
    p = {"num_classes": num_classes}
    p["conv1_w"], p["conv1_b"] = _prep_conv3x3_im2col(raw["conv1"], raw["bn1"])
    p["layers"] = []
    for blocks in raw["layers"]:
        pbs = []
        for bp in blocks:
            pb = {"stride": bp["stride"]}
            pb["conv1_w"], pb["conv1_b"] = _prep_conv3x3(bp["conv1"], bp["bn1"])
            pb["conv2_w"], pb["conv2_b"] = _prep_conv3x3(bp["conv2"], bp["bn2"])
            if "down_conv" in bp:
                pb["down_w"], pb["down_b"] = _prep_conv1x1(bp["down_conv"],
                                                           bp["down_bn"])
            pbs.append(pb)
        p["layers"].append(pbs)
    ncls, feat = raw["linear_w"].shape
    feat_p, ncls_p = _pad_up(feat), _pad_up(ncls)
    lw = jnp.zeros((feat_p, ncls_p),
                   jnp.float32).at[:feat, :ncls].set(raw["linear_w"].T)
    lb = jnp.zeros((1, ncls_p), jnp.float32).at[0, :ncls].set(raw["linear_b"])
    p["linear_w"] = lw.astype(jnp.bfloat16)
    p["linear_b"] = lb
    return p


# ---------------------------------------------------------------------------
# Forward pass
# ---------------------------------------------------------------------------
def block_forward(x, bp):
    out = conv3x3_bn_act(x, bp["conv1_w"], bp["conv1_b"],
                         stride=bp["stride"], relu=True)
    if "down_w" in bp:
        identity = conv1x1_bn(x, bp["down_w"], bp["down_b"],
                              stride=bp["stride"])
    else:
        identity = x
    # conv2 + folded-BN + residual add + ReLU, all in one Pallas kernel
    out = conv3x3_bn_act(out, bp["conv2_w"], bp["conv2_b"], stride=1,
                         relu=True, residual=identity)
    return out


def resnet_forward(x_nchw, params):
    x = jnp.transpose(x_nchw, (0, 2, 3, 1)).astype(jnp.bfloat16)  # NCHW->NHWC
    out = stem_conv_bn_relu(x, params["conv1_w"], params["conv1_b"])
    out = maxpool2d_3x3_s2_p1(out)
    for layer_blocks in params["layers"]:
        for bp in layer_blocks:
            out = block_forward(out, bp)
    feat = global_avgpool(out)                               # (N, C) bf16
    # dropout: identity (eval mode / p=0)
    logits_p = fused_matmul_bias(feat, params["linear_w"], params["linear_b"],
                                 relu=False, out_dtype=jnp.float32)
    return logits_p[:, :params["num_classes"]]


# ---------------------------------------------------------------------------
if __name__ == "__main__":
    key = jax.random.PRNGKey(0)
    pkey, xkey = jax.random.split(key)

    batch = 2
    image_channels = 3
    spatial = 16
    initial_out = 16
    num_classes = 10
    layers = [1, 1, 1, 1]

    raw = init_raw_params(pkey, image_channels, num_classes, layers,
                          initial_out)
    params = prepare_params(raw, num_classes)
    x = jax.random.normal(xkey, (batch, image_channels, spatial, spatial),
                          jnp.float32)

    logits = resnet_forward(x, params)
    logits = jax.block_until_ready(logits)

    assert logits.shape == (batch, num_classes), logits.shape
    assert bool(jnp.all(jnp.isfinite(logits)))
    print("KERNEL_OK")
</pallas_src>

<mosaic_0001>
module attributes {stable_mosaic.version = 11 : i64} {
  func.func @kernel(%arg0: i32, %arg1: i32, %arg2: memref<512x128xbf16, #tpu.memory_space<vmem>>, %arg3: memref<128x128xbf16, #tpu.memory_space<vmem>>, %arg4: memref<1x128xf32, #tpu.memory_space<vmem>>, %arg5: memref<512x128xbf16, #tpu.memory_space<vmem>>) attributes {dimension_semantics = [#tpu.dimension_semantics<parallel>, #tpu.dimension_semantics<parallel>], iteration_bounds = array<i64: 1, 1>, scalar_prefetch = 0 : i64, scratch_operands = 0 : i64, tpu.core_type = #tpu.core_type<tc>, window_params = [{transform_indices = @transform_0, window_bounds = array<i64: 512, 128>}, {transform_indices = @transform_1, window_bounds = array<i64: 128, 128>}, {transform_indices = @transform_2, window_bounds = array<i64: 1, 128>}, {transform_indices = @transform_3, window_bounds = array<i64: 512, 128>}]} {
    %c0 = arith.constant 0 : index
    %c0_0 = arith.constant 0 : index
    %0 = vector.load %arg2[%c0, %c0_0] : memref<512x128xbf16, #tpu.memory_space<vmem>>, vector<512x128xbf16>
    %c0_1 = arith.constant 0 : index
    %c0_2 = arith.constant 0 : index
    %1 = vector.load %arg3[%c0_1, %c0_2] : memref<128x128xbf16, #tpu.memory_space<vmem>>, vector<128x128xbf16>
    %cst = arith.constant dense<0.000000e+00> : vector<512x128xf32>
    %2 = tpu.matmul %0, %1, %cst {dimension_numbers = #tpu.dot_dimension_numbers<[1], [0], [0], [1], [0, 0, 1, 1], [], []>} : vector<512x128xbf16>, vector<128x128xbf16>, vector<512x128xf32> -> vector<512x128xf32>
    %c0_3 = arith.constant 0 : index
    %c0_4 = arith.constant 0 : index
    %3 = vector.load %arg4[%c0_3, %c0_4] : memref<1x128xf32, #tpu.memory_space<vmem>>, vector<1x128xf32>
    %4 = vector.broadcast %3 : vector<1x128xf32> to vector<512x128xf32>
    %5 = arith.addf %2, %4 : vector<512x128xf32>
    %cst_5 = arith.constant 0.000000e+00 : f32
    %6 = vector.broadcast %cst_5 : f32 to vector<512x128xf32>
    %7 = arith.maximumf %5, %6 : vector<512x128xf32>
    %8 = arith.truncf %7 : vector<512x128xf32> to vector<512x128xbf16>
    %c0_6 = arith.constant 0 : index
    %c0_7 = arith.constant 0 : index
    %9 = vector.load %arg5[%c0_6, %c0_7] : memref<512x128xbf16, #tpu.memory_space<vmem>>, vector<512x128xbf16>
    tpu.vector_store %arg5[%c0_6, %c0_7], %8 {strides = array<i32>} : memref<512x128xbf16, #tpu.memory_space<vmem>>, vector<512x128xbf16>,
    return
  }
  func.func @transform_0(%arg0: i32, %arg1: i32) -> (i32, i32) {
    %c0_i32 = arith.constant 0 : i32
    %c0_i32_0 = arith.constant 0 : i32
    return %arg0, %c0_i32 : i32, i32
  }
  func.func @transform_1(%arg0: i32, %arg1: i32) -> (i32, i32) {
    %c0_i32 = arith.constant 0 : i32
    %c0_i32_0 = arith.constant 0 : i32
    return %c0_i32, %arg1 : i32, i32
  }
  func.func @transform_2(%arg0: i32, %arg1: i32) -> (i32, i32) {
    %c0_i32 = arith.constant 0 : i32
    %c0_i32_0 = arith.constant 0 : i32
    return %c0_i32, %arg1 : i32, i32
  }
  func.func @transform_3(%arg0: i32, %arg1: i32) -> (i32, i32) {
    %c0_i32 = arith.constant 0 : i32
    return %arg0, %arg1 : i32, i32
  }
}

</mosaic_0001>

<llo_original>
// kernel: tpu_custom_call.1
$region0: #{tpu_custom_call.1}
  #allocation0 [shape = 'u32[]', space=smem, size = 0x4, offset = 0x4, fixed_abs, tag = 'smem constant byte address 0x4 - core index']
  #allocation1 [shape = 'u32[72,128]{1,0:T(1,128)}', space=vmem, size = 0x9000, scoped, tag = 'internal scratch']
  %s0 = inlined_call_operand.hbm [shape: bf16[512,128], index: 0, kind: input, shape index: {}]
  %s1 = inlined_call_operand.hbm [shape: bf16[128,128], index: 1, kind: input, shape index: {}]
  %s2 = inlined_call_operand.vmem [shape: f32[1,128], index: 2, kind: input, shape index: {}]
  %s3 = inlined_call_operand.hbm [shape: bf16[512,128], index: 3, kind: output, shape index: {}]
  %s4 = sld [smem:[#allocation0]]
  $region30: #{tpu_custom_call.1} parent=0
    _
  %s6 = ssub.s32 1, %s4
  %s7 = scalar_select 0, %s6, %s4
  $region1: #{tpu_custom_call.1} parent=0
    #allocation2 [shape = 'u8[131072]{0}', space=vmem, size = 0x20000, scoped, tag = 'input window, operand 0, single buffered']
    #allocation3 [shape = 's32[1]{0}', space=sflag, size = 0x4, scoped, tag = 'scoped memory for tpu_custom_call.1']
    #allocation4 [shape = 's32[1]{0}', space=sflag, size = 0x4, scoped, tag = 'scoped memory for tpu_custom_call.1']
    #allocation5 [shape = 'u8[32768]{0}', space=vmem, size = 0x8000, scoped, tag = 'input window, operand 1, single buffered']
    #allocation6 [shape = 's32[1]{0}', space=sflag, size = 0x4, scoped, tag = 'scoped memory for tpu_custom_call.1']
    #allocation7 [shape = 'u8[131072]{0}', space=vmem, size = 0x20000, scoped, tag = 'output window, operand 0, single buffered']
    %8 = vsyncpa [#allocation3], 0
    %9 = vsyncpa [#allocation6], 0
    %10 = vsyncpa [#allocation4], 0
    // Predicated region
    $region2: #{tpu_custom_call.1} parent=1 // pred_check
      _
    $region3: #{tpu_custom_call.1} parent=1 // pred_check_branch
      %12 = sbr.rel (0) target = $region5
    $region4: #{tpu_custom_call.1} parent=1 // pred_region
      %14 = vsyncadd [#allocation3], 0
      %s15 = sshll.u32 %s0, 4
      %s16 = int_to_ptr.hbm [resolvable:$true] %s15
      %s17 = sshll.u32 [#allocation2], 4
      %s18 = int_to_ptr.vmem [resolvable:$true] %s17
      %23 = dma.hbm_to_vmem [thread:$0]  %s16, 4096, %s18, [#allocation3], 64, 64, 4
    $region5: #{tpu_custom_call.1} parent=1 // pred_fallthru
      _
    // Predicated region
    $region6: #{tpu_custom_call.1} parent=1 // pred_check
      _
    $region7: #{tpu_custom_call.1} parent=1 // pred_check_branch
      %25 = sbr.rel (0) target = $region9
    $region8: #{tpu_custom_call.1} parent=1 // pred_region
      %27 = vsyncadd [#allocation6], 0
      %s28 = sshll.u32 %s1, 4
      %s29 = int_to_ptr.hbm [resolvable:$true] %s28
      %s30 = sshll.u32 [#allocation5], 4
      %s31 = int_to_ptr.vmem [resolvable:$true] %s30
      %36 = dma.hbm_to_vmem [thread:$0]  %s29, 1024, %s31, [#allocation6], 64, 64, 4
    $region9: #{tpu_custom_call.1} parent=1 // pred_fallthru
      _
    // Predicated region
    $region10: #{tpu_custom_call.1} parent=1 // pred_check
      _
    $region11: #{tpu_custom_call.1} parent=1 // pred_check_branch
      %38 = sbr.rel (0) target = $region13
    $region12: #{tpu_custom_call.1} parent=1 // pred_region
      _
    $region13: #{tpu_custom_call.1} parent=1 // pred_fallthru
      _
    // Predicated region
    $region14: #{tpu_custom_call.1} parent=1 // pred_check
      _
    $region15: #{tpu_custom_call.1} parent=1 // pred_check_branch
      %40 = sbr.rel (0) target = $region17
    $region16: #{tpu_custom_call.1} parent=1 // pred_region
      %42 = dma.done [#allocation3], 4096
    $region17: #{tpu_custom_call.1} parent=1 // pred_fallthru
      _
    // Predicated region
    $region18: #{tpu_custom_call.1} parent=1 // pred_check
      _
    $region19: #{tpu_custom_call.1} parent=1 // pred_check_branch
      %44 = sbr.rel (0) target = $region21
    $region20: #{tpu_custom_call.1} parent=1 // pred_region
      %46 = dma.done [#allocation6], 1024
    $region21: #{tpu_custom_call.1} parent=1 // pred_fallthru
      _
    %v47 = vld [vmem:[#allocation2] sm:$0xf]
    %v48 = vld [vmem:[#allocation2 + $0x4] sm:$0xf]
    %v49 = vld [vmem:[#allocation2 + $0x8] sm:$0xf]
    %v50 = vld [vmem:[#allocation2 + $0xc] sm:$0xf]
    %v51 = vld [vmem:[#allocation2 + $0x10] sm:$0xf]
    %v52 = vld [vmem:[#allocation2 + $0x14] sm:$0xf]
    %v53 = vld [vmem:[#allocation2 + $0x18] sm:$0xf]
    %v54 = vld [vmem:[#allocation2 + $0x1c] sm:$0xf]
    %v55 = vld [vmem:[#allocation2 + $0x20] sm:$0xf]
    %v56 = vld [vmem:[#allocation2 + $0x24] sm:$0xf]
    %v57 = vld [vmem:[#allocation2 + $0x28] sm:$0xf]
    %v58 = vld [vmem:[#allocation2 + $0x2c] sm:$0xf]
    %v59 = vld [vmem:[#allocation2 + $0x30] sm:$0xf]
    %v60 = vld [vmem:[#allocation2 + $0x34] sm:$0xf]
    %v61 = vld [vmem:[#allocation2 + $0x38] sm:$0xf]
    %v62 = vld [vmem:[#allocation2 + $0x3c] sm:$0xf]
    %v63 = vld [vmem:[#allocation2 + $0x40] sm:$0xf]
    %v64 = vld [vmem:[#allocation2 + $0x44] sm:$0xf]
    %v65 = vld [vmem:[#allocation2 + $0x48] sm:$0xf]
    %v66 = vld [vmem:[#allocation2 + $0x4c] sm:$0xf]
    %v67 = vld [vmem:[#allocation2 + $0x50] sm:$0xf]
    %v68 = vld [vmem:[#allocation2 + $0x54] sm:$0xf]
    %v69 = vld [vmem:[#allocation2 + $0x58] sm:$0xf]
    %v70 = vld [vmem:[#allocation2 + $0x5c] sm:$0xf]
    %v71 = vld [vmem:[#allocation2 + $0x60] sm:$0xf]
    %v72 = vld [vmem:[#allocation2 + $0x64] sm:$0xf]
    %v73 = vld [vmem:[#allocation2 + $0x68] sm:$0xf]
    %v74 = vld [vmem:[#allocation2 + $0x6c] sm:$0xf]
    %v75 = vld [vmem:[#allocation2 + $0x70] sm:$0xf]
    %v76 = vld [vmem:[#allocation2 + $0x74] sm:$0xf]
    %v77 = vld [vmem:[#allocation2 + $0x78] sm:$0xf]
    %v78 = vld [vmem:[#allocation2 + $0x7c] sm:$0xf]
    %v79 = vld [vmem:[#allocation2 + $0x80] sm:$0xf]
    %v80 = vld [vmem:[#allocation2 + $0x84] sm:$0xf]
    %v81 = vld [vmem:[#allocation2 + $0x88] sm:$0xf]
    %v82 = vld [vmem:[#allocation2 + $0x8c] sm:$0xf]
    %v83 = vld [vmem:[#allocation2 + $0x90] sm:$0xf]
    %v84 = vld [vmem:[#allocation2 + $0x94] sm:$0xf]
    %v85 = vld [vmem:[#allocation2 + $0x98] sm:$0xf]
    %v86 = vld [vmem:[#allocation2 + $0x9c] sm:$0xf]
    %v87 = vld [vmem:[#allocation2 + $0xa0] sm:$0xf]
    %v88 = vld [vmem:[#allocation2 + $0xa4] sm:$0xf]
    %v89 = vld [vmem:[#allocation2 + $0xa8] sm:$0xf]
    %v90 = vld [vmem:[#allocation2 + $0xac] sm:$0xf]
    %v91 = vld [vmem:[#allocation2 + $0xb0] sm:$0xf]
    %v92 = vld [vmem:[#allocation2 + $0xb4] sm:$0xf]
    %v93 = vld [vmem:[#allocation2 + $0xb8] sm:$0xf]
    %v94 = vld [vmem:[#allocation2 + $0xbc] sm:$0xf]
    %v95 = vld [vmem:[#allocation2 + $0xc0] sm:$0xf]
    %v96 = vld [vmem:[#allocation2 + $0xc4] sm:$0xf]
    %v97 = vld [vmem:[#allocation2 + $0xc8] sm:$0xf]
    %v98 = vld [vmem:[#allocation2 + $0xcc] sm:$0xf]
    %v99 = vld [vmem:[#allocation2 + $0xd0] sm:$0xf]
    %v100 = vld [vmem:[#allocation2 + $0xd4] sm:$0xf]
    %v101 = vld [vmem:[#allocation2 + $0xd8] sm:$0xf]
    %v102 = vld [vmem:[#allocation2 + $0xdc] sm:$0xf]
    %v103 = vld [vmem:[#allocation2 + $0xe0] sm:$0xf]
    %v104 = vld [vmem:[#allocation2 + $0xe4] sm:$0xf]
    %v105 = vld [vmem:[#allocation2 + $0xe8] sm:$0xf]
    %v106 = vld [vmem:[#allocation2 + $0xec] sm:$0xf]
    %v107 = vld [vmem:[#allocation2 + $0xf0] sm:$0xf]
    %v108 = vld [vmem:[#allocation2 + $0xf4] sm:$0xf]
    %v109 = vld [vmem:[#allocation2 + $0xf8] sm:$0xf]
    %v110 = vld [vmem:[#allocation2 + $0xfc] sm:$0xf]
    %v111 = vld [vmem:[#allocation5] sm:$0xf]
    %v112 = vld [vmem:[#allocation5 + $0x4] sm:$0xf]
    %v113 = vld [vmem:[#allocation5 + $0x8] sm:$0xf]
    %v114 = vld [vmem:[#allocation5 + $0xc] sm:$0xf]
    %v115 = vld [vmem:[#allocation5 + $0x10] sm:$0xf]
    %v116 = vld [vmem:[#allocation5 + $0x14] sm:$0xf]
    %v117 = vld [vmem:[#allocation5 + $0x18] sm:$0xf]
    %v118 = vld [vmem:[#allocation5 + $0x1c] sm:$0xf]
    %v119 = vld [vmem:[#allocation5 + $0x20] sm:$0xf]
    %v120 = vld [vmem:[#allocation5 + $0x24] sm:$0xf]
    %v121 = vld [vmem:[#allocation5 + $0x28] sm:$0xf]
    %v122 = vld [vmem:[#allocation5 + $0x2c] sm:$0xf]
    %v123 = vld [vmem:[#allocation5 + $0x30] sm:$0xf]
    %v124 = vld [vmem:[#allocation5 + $0x34] sm:$0xf]
    %v125 = vld [vmem:[#allocation5 + $0x38] sm:$0xf]
    %v126 = vld [vmem:[#allocation5 + $0x3c] sm:$0xf]
    %v127 = vld [vmem:[%s2] sm:$0x1]
    %v129 = vperm.slane %v127, 0
    %v195 = vunpack.c.l.b16 %v47
    %v196 = vunpack.c.l.b16 %v48
    %v197 = vunpack.c.l.b16 %v49
    %v198 = vunpack.c.l.b16 %v50
    %v199 = vunpack.c.l.b16 %v51
    %v200 = vunpack.c.l.b16 %v52
    %v201 = vunpack.c.l.b16 %v53
    %v202 = vunpack.c.l.b16 %v54
    %v203 = vunpack.c.l.b16 %v55
    %v204 = vunpack.c.l.b16 %v56
    %v205 = vunpack.c.l.b16 %v57
    %v206 = vunpack.c.l.b16 %v58
    %v207 = vunpack.c.l.b16 %v59
    %v208 = vunpack.c.l.b16 %v60
    %v209 = vunpack.c.l.b16 %v61
    %v210 = vunpack.c.l.b16 %v62
    %v211 = vunpack.c.l.b16 %v63
    %v212 = vunpack.c.l.b16 %v64
    %v213 = vunpack.c.l.b16 %v65
    %v214 = vunpack.c.l.b16 %v66
    %v215 = vunpack.c.l.b16 %v67
    %v216 = vunpack.c.l.b16 %v68
    %v217 = vunpack.c.l.b16 %v69
    %v218 = vunpack.c.l.b16 %v70
    %v219 = vunpack.c.l.b16 %v71
    %v220 = vunpack.c.l.b16 %v72
    %v221 = vunpack.c.l.b16 %v73
    %v222 = vunpack.c.l.b16 %v74
    %v223 = vunpack.c.l.b16 %v75
    %v224 = vunpack.c.l.b16 %v76
    %v225 = vunpack.c.l.b16 %v77
    %v226 = vunpack.c.l.b16 %v78
    %v227 = vunpack.c.l.b16 %v79
    %v228 = vunpack.c.l.b16 %v80
    %v229 = vunpack.c.l.b16 %v81
    %v230 = vunpack.c.l.b16 %v82
    %v231 = vunpack.c.l.b16 %v83
    %v232 = vunpack.c.l.b16 %v84
    %v233 = vunpack.c.l.b16 %v85
    %v234 = vunpack.c.l.b16 %v86
    %v235 = vunpack.c.l.b16 %v87
    %v236 = vunpack.c.l.b16 %v88
    %v237 = vunpack.c.l.b16 %v89
    %v238 = vunpack.c.l.b16 %v90
    %v239 = vunpack.c.l.b16 %v91
    %v240 = vunpack.c.l.b16 %v92
    %v241 = vunpack.c.l.b16 %v93
    %v242 = vunpack.c.l.b16 %v94
    %v243 = vunpack.c.l.b16 %v95
    %v244 = vunpack.c.l.b16 %v96
    %v245 = vunpack.c.l.b16 %v97
    %v246 = vunpack.c.l.b16 %v98
    %v247 = vunpack.c.l.b16 %v99
    %v248 = vunpack.c.l.b16 %v100
    %v249 = vunpack.c.l.b16 %v101
    %v250 = vunpack.c.l.b16 %v102
    %v251 = vunpack.c.l.b16 %v103
    %v252 = vunpack.c.l.b16 %v104
    %v253 = vunpack.c.l.b16 %v105
    %v254 = vunpack.c.l.b16 %v106
    %v255 = vunpack.c.l.b16 %v107
    %v256 = vunpack.c.l.b16 %v108
    %v257 = vunpack.c.l.b16 %v109
    %v258 = vunpack.c.l.b16 %v110
    %v259 = vpack.c.b16 %v196, %v195
    %v260 = vpack.c.b16 %v198, %v197
    %v261 = vpack.c.b16 %v200, %v199
    %v262 = vpack.c.b16 %v202, %v201
    %v263 = vpack.c.b16 %v204, %v203
    %v264 = vpack.c.b16 %v206, %v205
    %v265 = vpack.c.b16 %v208, %v207
    %v266 = vpack.c.b16 %v210, %v209
    %v267 = vpack.c.b16 %v212, %v211
    %v268 = vpack.c.b16 %v214, %v213
    %v269 = vpack.c.b16 %v216, %v215
    %v270 = vpack.c.b16 %v218, %v217
    %v271 = vpack.c.b16 %v220, %v219
    %v272 = vpack.c.b16 %v222, %v221
    %v273 = vpack.c.b16 %v224, %v223
    %v274 = vpack.c.b16 %v226, %v225
    %v275 = vpack.c.b16 %v228, %v227
    %v276 = vpack.c.b16 %v230, %v229
    %v277 = vpack.c.b16 %v232, %v231
    %v278 = vpack.c.b16 %v234, %v233
    %v279 = vpack.c.b16 %v236, %v235
    %v280 = vpack.c.b16 %v238, %v237
    %v281 = vpack.c.b16 %v240, %v239
    %v282 = vpack.c.b16 %v242, %v241
    %v283 = vpack.c.b16 %v244, %v243
    %v284 = vpack.c.b16 %v246, %v245
    %v285 = vpack.c.b16 %v248, %v247
    %v286 = vpack.c.b16 %v250, %v249
    %v287 = vpack.c.b16 %v252, %v251
    %v288 = vpack.c.b16 %v254, %v253
    %v289 = vpack.c.b16 %v256, %v255
    %v290 = vpack.c.b16 %v258, %v257
    %v339 = vunpack.c.l.b16 %v111
    %v340 = vunpack.c.l.b16 %v112
    %v341 = vunpack.c.l.b16 %v113
    %v342 = vunpack.c.l.b16 %v114
    %v343 = vunpack.c.l.b16 %v115
    %v344 = vunpack.c.l.b16 %v116
    %v345 = vunpack.c.l.b16 %v117
    %v346 = vunpack.c.l.b16 %v118
    %v347 = vunpack.c.l.b16 %v119
    %v348 = vunpack.c.l.b16 %v120
    %v349 = vunpack.c.l.b16 %v121
    %v350 = vunpack.c.l.b16 %v122
    %v351 = vunpack.c.l.b16 %v123
    %v352 = vunpack.c.l.b16 %v124
    %v353 = vunpack.c.l.b16 %v125
    %v354 = vunpack.c.l.b16 %v126
    %v355 = vpack.c.b16 %v340, %v339
    %v356 = vpack.c.b16 %v342, %v341
    %v357 = vpack.c.b16 %v344, %v343
    %v358 = vpack.c.b16 %v346, %v345
    %v359 = vpack.c.b16 %v348, %v347
    %v360 = vpack.c.b16 %v350, %v349
    %v361 = vpack.c.b16 %v352, %v351
    %v362 = vpack.c.b16 %v354, %v353
    %371 = vmatpush.bf16.msra.mxu0 %v362
    %372 = vmatpush.bf16.msra.mxu0 %v361
    %373 = vmatpush.bf16.msra.mxu0 %v360
    %374 = vmatpush.bf16.msra.mxu0 %v359
    %375 = vmatpush.bf16.msra.mxu0 %v358
    %376 = vmatpush.bf16.msra.mxu0 %v357
    %377 = vmatpush.bf16.msra.mxu0 %v356
    %378 = vmatpush.bf16.msra.mxu0 %v355
    %379 = vmatmul.bf16.gmra.mxu0 %v259
    %v380 = vpop.f32.mrf.mxu0
    %v381 = vadd.f32 %v129, %v380
    %v382 = vpop.f32.mrf.mxu0
    %v383 = vadd.f32 %v129, %v382
    %384 = vmatmul.bf16.gmra.mxu0 %v260
    %v385 = vpop.f32.mrf.mxu0
    %v386 = vadd.f32 %v129, %v385
    %v387 = vpop.f32.mrf.mxu0
    %v388 = vadd.f32 %v129, %v387
    %389 = vmatmul.bf16.gmra.mxu0 %v261
    %v390 = vpop.f32.mrf.mxu0
    %v391 = vadd.f32 %v129, %v390
    %v392 = vpop.f32.mrf.mxu0
    %v393 = vadd.f32 %v129, %v392
    %394 = vmatmul.bf16.gmra.mxu0 %v262
    %v395 = vpop.f32.mrf.mxu0
    %v396 = vadd.f32 %v129, %v395
    %v397 = vpop.f32.mrf.mxu0
    %v398 = vadd.f32 %v129, %v397
    %399 = vmatmul.bf16.gmra.mxu0 %v263
    %v400 = vpop.f32.mrf.mxu0
    %v401 = vadd.f32 %v129, %v400
    %v402 = vpop.f32.mrf.mxu0
    %v403 = vadd.f32 %v129, %v402
    %404 = vmatmul.bf16.gmra.mxu0 %v264
    %v405 = vpop.f32.mrf.mxu0
    %v406 = vadd.f32 %v129, %v405
    %v407 = vpop.f32.mrf.mxu0
    %v408 = vadd.f32 %v129, %v407
    %409 = vmatmul.bf16.gmra.mxu0 %v265
    %v410 = vpop.f32.mrf.mxu0
    %v411 = vadd.f32 %v129, %v410
    %v412 = vpop.f32.mrf.mxu0
    %v413 = vadd.f32 %v129, %v412
    %414 = vmatmul.bf16.gmra.mxu0 %v266
    %v415 = vpop.f32.mrf.mxu0
    %v416 = vadd.f32 %v129, %v415
    %v417 = vpop.f32.mrf.mxu0
    %v418 = vadd.f32 %v129, %v417
    %419 = vmatmul.bf16.gmra.mxu0 %v267
    %v420 = vpop.f32.mrf.mxu0
    %v421 = vadd.f32 %v129, %v420
    %v422 = vpop.f32.mrf.mxu0
    %v423 = vadd.f32 %v129, %v422
    %424 = vmatmul.bf16.gmra.mxu0 %v268
    %v425 = vpop.f32.mrf.mxu0
    %v426 = vadd.f32 %v129, %v425
    %v427 = vpop.f32.mrf.mxu0
    %v428 = vadd.f32 %v129, %v427
    %429 = vmatmul.bf16.gmra.mxu0 %v269
    %v430 = vpop.f32.mrf.mxu0
    %v431 = vadd.f32 %v129, %v430
    %v432 = vpop.f32.mrf.mxu0
    %v433 = vadd.f32 %v129, %v432
    %434 = vmatmul.bf16.gmra.mxu0 %v270
    %v435 = vpop.f32.mrf.mxu0
    %v436 = vadd.f32 %v129, %v435
    %v437 = vpop.f32.mrf.mxu0
    %v438 = vadd.f32 %v129, %v437
    %439 = vmatmul.bf16.gmra.mxu0 %v271
    %v440 = vpop.f32.mrf.mxu0
    %v441 = vadd.f32 %v129, %v440
    %v442 = vpop.f32.mrf.mxu0
    %v443 = vadd.f32 %v129, %v442
    %444 = vmatmul.bf16.gmra.mxu0 %v272
    %v445 = vpop.f32.mrf.mxu0
    %v446 = vadd.f32 %v129, %v445
    %v447 = vpop.f32.mrf.mxu0
    %v448 = vadd.f32 %v129, %v447
    %449 = vmatmul.bf16.gmra.mxu0 %v273
    %v450 = vpop.f32.mrf.mxu0
    %v451 = vadd.f32 %v129, %v450
    %v452 = vpop.f32.mrf.mxu0
    %v453 = vadd.f32 %v129, %v452
    %454 = vmatmul.bf16.gmra.mxu0 %v274
    %v455 = vpop.f32.mrf.mxu0
    %v456 = vadd.f32 %v129, %v455
    %v457 = vpop.f32.mrf.mxu0
    %v458 = vadd.f32 %v129, %v457
    %459 = vmatmul.bf16.gmra.mxu0 %v275
    %v460 = vpop.f32.mrf.mxu0
    %v461 = vadd.f32 %v129, %v460
    %v462 = vpop.f32.mrf.mxu0
    %v463 = vadd.f32 %v129, %v462
    %464 = vmatmul.bf16.gmra.mxu0 %v276
    %v465 = vpop.f32.mrf.mxu0
    %v466 = vadd.f32 %v129, %v465
    %v467 = vpop.f32.mrf.mxu0
    %v468 = vadd.f32 %v129, %v467
    %469 = vmatmul.bf16.gmra.mxu0 %v277
    %v470 = vpop.f32.mrf.mxu0
    %v471 = vadd.f32 %v129, %v470
    %v472 = vpop.f32.mrf.mxu0
    %v473 = vadd.f32 %v129, %v472
    %474 = vmatmul.bf16.gmra.mxu0 %v278
    %v475 = vpop.f32.mrf.mxu0
    %v476 = vadd.f32 %v129, %v475
    %v477 = vpop.f32.mrf.mxu0
    %v478 = vadd.f32 %v129, %v477
    %479 = vmatmul.bf16.gmra.mxu0 %v279
    %v480 = vpop.f32.mrf.mxu0
    %v481 = vadd.f32 %v129, %v480
    %v482 = vpop.f32.mrf.mxu0
    %v483 = vadd.f32 %v129, %v482
    %484 = vmatmul.bf16.gmra.mxu0 %v280
    %v485 = vpop.f32.mrf.mxu0
    %v486 = vadd.f32 %v129, %v485
    %v487 = vpop.f32.mrf.mxu0
    %v488 = vadd.f32 %v129, %v487
    %489 = vmatmul.bf16.gmra.mxu0 %v281
    %v490 = vpop.f32.mrf.mxu0
    %v491 = vadd.f32 %v129, %v490
    %v492 = vpop.f32.mrf.mxu0
    %v493 = vadd.f32 %v129, %v492
    %494 = vmatmul.bf16.gmra.mxu0 %v282
    %v495 = vpop.f32.mrf.mxu0
    %v496 = vadd.f32 %v129, %v495
    %v497 = vpop.f32.mrf.mxu0
    %v498 = vadd.f32 %v129, %v497
    %499 = vmatmul.bf16.gmra.mxu0 %v283
    %v500 = vpop.f32.mrf.mxu0
    %v501 = vadd.f32 %v129, %v500
    %v502 = vpop.f32.mrf.mxu0
    %v503 = vadd.f32 %v129, %v502
    %504 = vmatmul.bf16.gmra.mxu0 %v284
    %v505 = vpop.f32.mrf.mxu0
    %v506 = vadd.f32 %v129, %v505
    %v507 = vpop.f32.mrf.mxu0
    %v508 = vadd.f32 %v129, %v507
    %509 = vmatmul.bf16.gmra.mxu0 %v285
    %v510 = vpop.f32.mrf.mxu0
    %v511 = vadd.f32 %v129, %v510
    %v512 = vpop.f32.mrf.mxu0
    %v513 = vadd.f32 %v129, %v512
    %514 = vmatmul.bf16.gmra.mxu0 %v286
    %v515 = vpop.f32.mrf.mxu0
    %v516 = vadd.f32 %v129, %v515
    %v517 = vpop.f32.mrf.mxu0
    %v518 = vadd.f32 %v129, %v517
    %519 = vmatmul.bf16.gmra.mxu0 %v287
    %v520 = vpop.f32.mrf.mxu0
    %v521 = vadd.f32 %v129, %v520
    %v522 = vpop.f32.mrf.mxu0
    %v523 = vadd.f32 %v129, %v522
    %524 = vmatmul.bf16.gmra.mxu0 %v288
    %v525 = vpop.f32.mrf.mxu0
    %v526 = vadd.f32 %v129, %v525
    %v527 = vpop.f32.mrf.mxu0
    %v528 = vadd.f32 %v129, %v527
    %529 = vmatmul.bf16.gmra.mxu0 %v289
    %v530 = vpop.f32.mrf.mxu0
    %v531 = vadd.f32 %v129, %v530
    %v532 = vpop.f32.mrf.mxu0
    %v533 = vadd.f32 %v129, %v532
    %534 = vmatmul.bf16.gmra.mxu0 %v290
    %v535 = vpop.f32.mrf.mxu0
    %v536 = vadd.f32 %v129, %v535
    %v537 = vpop.f32.mrf.mxu0
    %v538 = vadd.f32 %v129, %v537
    %539 = vdwg.mxu0
    %v540 = vmax.f32 %v381, 0.0
    %v541 = vmax.f32 %v383, 0.0
    %v542 = vmax.f32 %v386, 0.0
    %v543 = vmax.f32 %v388, 0.0
    %v544 = vmax.f32 %v391, 0.0
    %v545 = vmax.f32 %v393, 0.0
    %v546 = vmax.f32 %v396, 0.0
    %v547 = vmax.f32 %v398, 0.0
    %v548 = vmax.f32 %v401, 0.0
    %v549 = vmax.f32 %v403, 0.0
    %v550 = vmax.f32 %v406, 0.0
    %v551 = vmax.f32 %v408, 0.0
    %v552 = vmax.f32 %v411, 0.0
    %v553 = vmax.f32 %v413, 0.0
    %v554 = vmax.f32 %v416, 0.0
    %v555 = vmax.f32 %v418, 0.0
    %v556 = vmax.f32 %v421, 0.0
    %v557 = vmax.f32 %v423, 0.0
    %v558 = vmax.f32 %v426, 0.0
    %v559 = vmax.f32 %v428, 0.0
    %v560 = vmax.f32 %v431, 0.0
    %v561 = vmax.f32 %v433, 0.0
    %v562 = vmax.f32 %v436, 0.0
    %v563 = vmax.f32 %v438, 0.0
    %v564 = vmax.f32 %v441, 0.0
    %v565 = vmax.f32 %v443, 0.0
    %v566 = vmax.f32 %v446, 0.0
    %v567 = vmax.f32 %v448, 0.0
    %v568 = vmax.f32 %v451, 0.0
    %v569 = vmax.f32 %v453, 0.0
    %v570 = vmax.f32 %v456, 0.0
    %v571 = vmax.f32 %v458, 0.0
    %v572 = vmax.f32 %v461, 0.0
    %v573 = vmax.f32 %v463, 0.0
    %v574 = vmax.f32 %v466, 0.0
    %v575 = vmax.f32 %v468, 0.0
    %v576 = vmax.f32 %v471, 0.0
    %v577 = vmax.f32 %v473, 0.0
    %v578 = vmax.f32 %v476, 0.0
    %v579 = vmax.f32 %v478, 0.0
    %v580 = vmax.f32 %v481, 0.0
    %v581 = vmax.f32 %v483, 0.0
    %v582 = vmax.f32 %v486, 0.0
    %v583 = vmax.f32 %v488, 0.0
    %v584 = vmax.f32 %v491, 0.0
    %v585 = vmax.f32 %v493, 0.0
    %v586 = vmax.f32 %v496, 0.0
    %v587 = vmax.f32 %v498, 0.0
    %v588 = vmax.f32 %v501, 0.0
    %v589 = vmax.f32 %v503, 0.0
    %v590 = vmax.f32 %v506, 0.0
    %v591 = vmax.f32 %v508, 0.0
    %v592 = vmax.f32 %v511, 0.0
    %v593 = vmax.f32 %v513, 0.0
    %v594 = vmax.f32 %v516, 0.0
    %v595 = vmax.f32 %v518, 0.0
    %v596 = vmax.f32 %v521, 0.0
    %v597 = vmax.f32 %v523, 0.0
    %v598 = vmax.f32 %v526, 0.0
    %v599 = vmax.f32 %v528, 0.0
    %v600 = vmax.f32 %v531, 0.0
    %v601 = vmax.f32 %v533, 0.0
    %v602 = vmax.f32 %v536, 0.0
    %v603 = vmax.f32 %v538, 0.0
    %v604 = vpack.c.bf16 %v540, %v540
    %v605 = vpack.c.bf16 %v541, %v541
    %v606 = vpack.c.bf16 %v542, %v542
    %v607 = vpack.c.bf16 %v543, %v543
    %v608 = vpack.c.bf16 %v544, %v544
    %v609 = vpack.c.bf16 %v545, %v545
    %v610 = vpack.c.bf16 %v546, %v546
    %v611 = vpack.c.bf16 %v547, %v547
    %v612 = vpack.c.bf16 %v548, %v548
    %v613 = vpack.c.bf16 %v549, %v549
    %v614 = vpack.c.bf16 %v550, %v550
    %v615 = vpack.c.bf16 %v551, %v551
    %v616 = vpack.c.bf16 %v552, %v552
    %v617 = vpack.c.bf16 %v553, %v553
    %v618 = vpack.c.bf16 %v554, %v554
    %v619 = vpack.c.bf16 %v555, %v555
    %v620 = vpack.c.bf16 %v556, %v556
    %v621 = vpack.c.bf16 %v557, %v557
    %v622 = vpack.c.bf16 %v558, %v558
    %v623 = vpack.c.bf16 %v559, %v559
    %v624 = vpack.c.bf16 %v560, %v560
    %v625 = vpack.c.bf16 %v561, %v561
    %v626 = vpack.c.bf16 %v562, %v562
    %v627 = vpack.c.bf16 %v563, %v563
    %v628 = vpack.c.bf16 %v564, %v564
    %v629 = vpack.c.bf16 %v565, %v565
    %v630 = vpack.c.bf16 %v566, %v566
    %v631 = vpack.c.bf16 %v567, %v567
    %v632 = vpack.c.bf16 %v568, %v568
    %v633 = vpack.c.bf16 %v569, %v569
    %v634 = vpack.c.bf16 %v570, %v570
    %v635 = vpack.c.bf16 %v571, %v571
    %v636 = vpack.c.bf16 %v572, %v572
    %v637 = vpack.c.bf16 %v573, %v573
    %v638 = vpack.c.bf16 %v574, %v574
    %v639 = vpack.c.bf16 %v575, %v575
    %v640 = vpack.c.bf16 %v576, %v576
    %v641 = vpack.c.bf16 %v577, %v577
    %v642 = vpack.c.bf16 %v578, %v578
    %v643 = vpack.c.bf16 %v579, %v579
    %v644 = vpack.c.bf16 %v580, %v580
    %v645 = vpack.c.bf16 %v581, %v581
    %v646 = vpack.c.bf16 %v582, %v582
    %v647 = vpack.c.bf16 %v583, %v583
    %v648 = vpack.c.bf16 %v584, %v584
    %v649 = vpack.c.bf16 %v585, %v585
    %v650 = vpack.c.bf16 %v586, %v586
    %v651 = vpack.c.bf16 %v587, %v587
    %v652 = vpack.c.bf16 %v588, %v588
    %v653 = vpack.c.bf16 %v589, %v589
    %v654 = vpack.c.bf16 %v590, %v590
    %v655 = vpack.c.bf16 %v591, %v591
    %v656 = vpack.c.bf16 %v592, %v592
    %v657 = vpack.c.bf16 %v593, %v593
    %v658 = vpack.c.bf16 %v594, %v594
    %v659 = vpack.c.bf16 %v595, %v595
    %v660 = vpack.c.bf16 %v596, %v596
    %v661 = vpack.c.bf16 %v597, %v597
    %v662 = vpack.c.bf16 %v598, %v598
    %v663 = vpack.c.bf16 %v599, %v599
    %v664 = vpack.c.bf16 %v600, %v600
    %v665 = vpack.c.bf16 %v601, %v601
    %v666 = vpack.c.bf16 %v602, %v602
    %v667 = vpack.c.bf16 %v603, %v603
    %668 = vst [vmem:[#allocation7] sm:$0xf] %v604
    %669 = vst [vmem:[#allocation7 + $0x4] sm:$0xf] %v605
    %670 = vst [vmem:[#allocation7 + $0x8] sm:$0xf] %v606
    %671 = vst [vmem:[#allocation7 + $0xc] sm:$0xf] %v607
    %672 = vst [vmem:[#allocation7 + $0x10] sm:$0xf] %v608
    %673 = vst [vmem:[#allocation7 + $0x14] sm:$0xf] %v609
    %674 = vst [vmem:[#allocation7 + $0x18] sm:$0xf] %v610
    %675 = vst [vmem:[#allocation7 + $0x1c] sm:$0xf] %v611
    %676 = vst [vmem:[#allocation7 + $0x20] sm:$0xf] %v612
    %677 = vst [vmem:[#allocation7 + $0x24] sm:$0xf] %v613
    %678 = vst [vmem:[#allocation7 + $0x28] sm:$0xf] %v614
    %679 = vst [vmem:[#allocation7 + $0x2c] sm:$0xf] %v615
    %680 = vst [vmem:[#allocation7 + $0x30] sm:$0xf] %v616
    %681 = vst [vmem:[#allocation7 + $0x34] sm:$0xf] %v617
    %682 = vst [vmem:[#allocation7 + $0x38] sm:$0xf] %v618
    %683 = vst [vmem:[#allocation7 + $0x3c] sm:$0xf] %v619
    %684 = vst [vmem:[#allocation7 + $0x40] sm:$0xf] %v620
    %685 = vst [vmem:[#allocation7 + $0x44] sm:$0xf] %v621
    %686 = vst [vmem:[#allocation7 + $0x48] sm:$0xf] %v622
    %687 = vst [vmem:[#allocation7 + $0x4c] sm:$0xf] %v623
    %688 = vst [vmem:[#allocation7 + $0x50] sm:$0xf] %v624
    %689 = vst [vmem:[#allocation7 + $0x54] sm:$0xf] %v625
    %690 = vst [vmem:[#allocation7 + $0x58] sm:$0xf] %v626
    %691 = vst [vmem:[#allocation7 + $0x5c] sm:$0xf] %v627
    %692 = vst [vmem:[#allocation7 + $0x60] sm:$0xf] %v628
    %693 = vst [vmem:[#allocation7 + $0x64] sm:$0xf] %v629
    %694 = vst [vmem:[#allocation7 + $0x68] sm:$0xf] %v630
    %695 = vst [vmem:[#allocation7 + $0x6c] sm:$0xf] %v631
    %696 = vst [vmem:[#allocation7 + $0x70] sm:$0xf] %v632
    %697 = vst [vmem:[#allocation7 + $0x74] sm:$0xf] %v633
    %698 = vst [vmem:[#allocation7 + $0x78] sm:$0xf] %v634
    %699 = vst [vmem:[#allocation7 + $0x7c] sm:$0xf] %v635
    %700 = vst [vmem:[#allocation7 + $0x80] sm:$0xf] %v636
    %701 = vst [vmem:[#allocation7 + $0x84] sm:$0xf] %v637
    %702 = vst [vmem:[#allocation7 + $0x88] sm:$0xf] %v638
    %703 = vst [vmem:[#allocation7 + $0x8c] sm:$0xf] %v639
    %704 = vst [vmem:[#allocation7 + $0x90] sm:$0xf] %v640
    %705 = vst [vmem:[#allocation7 + $0x94] sm:$0xf] %v641
    %706 = vst [vmem:[#allocation7 + $0x98] sm:$0xf] %v642
    %707 = vst [vmem:[#allocation7 + $0x9c] sm:$0xf] %v643
    %708 = vst [vmem:[#allocation7 + $0xa0] sm:$0xf] %v644
    %709 = vst [vmem:[#allocation7 + $0xa4] sm:$0xf] %v645
    %710 = vst [vmem:[#allocation7 + $0xa8] sm:$0xf] %v646
    %711 = vst [vmem:[#allocation7 + $0xac] sm:$0xf] %v647
    %712 = vst [vmem:[#allocation7 + $0xb0] sm:$0xf] %v648
    %713 = vst [vmem:[#allocation7 + $0xb4] sm:$0xf] %v649
    %714 = vst [vmem:[#allocation7 + $0xb8] sm:$0xf] %v650
    %715 = vst [vmem:[#allocation7 + $0xbc] sm:$0xf] %v651
    %716 = vst [vmem:[#allocation7 + $0xc0] sm:$0xf] %v652
    %717 = vst [vmem:[#allocation7 + $0xc4] sm:$0xf] %v653
    %718 = vst [vmem:[#allocation7 + $0xc8] sm:$0xf] %v654
    %719 = vst [vmem:[#allocation7 + $0xcc] sm:$0xf] %v655
    %720 = vst [vmem:[#allocation7 + $0xd0] sm:$0xf] %v656
    %721 = vst [vmem:[#allocation7 + $0xd4] sm:$0xf] %v657
    %722 = vst [vmem:[#allocation7 + $0xd8] sm:$0xf] %v658
    %723 = vst [vmem:[#allocation7 + $0xdc] sm:$0xf] %v659
    %724 = vst [vmem:[#allocation7 + $0xe0] sm:$0xf] %v660
    %725 = vst [vmem:[#allocation7 + $0xe4] sm:$0xf] %v661
    %726 = vst [vmem:[#allocation7 + $0xe8] sm:$0xf] %v662
    %727 = vst [vmem:[#allocation7 + $0xec] sm:$0xf] %v663
    %728 = vst [vmem:[#allocation7 + $0xf0] sm:$0xf] %v664
    %729 = vst [vmem:[#allocation7 + $0xf4] sm:$0xf] %v665
    %730 = vst [vmem:[#allocation7 + $0xf8] sm:$0xf] %v666
    %731 = vst [vmem:[#allocation7 + $0xfc] sm:$0xf] %v667
    // Predicated region
    $region22: #{tpu_custom_call.1} parent=1 // pred_check
      _
    $region23: #{tpu_custom_call.1} parent=1 // pred_check_branch
      %733 = sbr.rel (0) target = $region25
    $region24: #{tpu_custom_call.1} parent=1 // pred_region
      %735 = vsyncadd [#allocation4], 0
      %s736 = sshll.u32 [#allocation7], 4
      %s737 = int_to_ptr.vmem [resolvable:$true] %s736
      %s738 = sshll.u32 %s3, 4
      %s739 = int_to_ptr.hbm [resolvable:$true] %s738
      %744 = dma.vmem_to_hbm [thread:$0]  %s737, 4096, %s739, [#allocation4], 64, 64, 4
    $region25: #{tpu_custom_call.1} parent=1 // pred_fallthru
      _
    // Predicated region
    $region26: #{tpu_custom_call.1} parent=1 // pred_check
      _
    $region27: #{tpu_custom_call.1} parent=1 // pred_check_branch
      %746 = sbr.rel (0) target = $region29
    $region28: #{tpu_custom_call.1} parent=1 // pred_region
      %748 = dma.done [#allocation4], 4096
    $region29: #{tpu_custom_call.1} parent=1 // pred_fallthru
      _
    %749 = vsyncpa [#allocation3], 1
    %750 = vsyncpa [#allocation6], 1
    %751 = vsyncpa [#allocation4], 1

</llo_original>
